<compile_context>
chip_gen: v6e
topology: v6e:2x2x1
jax: 0.10.0
libtpu: 0.0.40
codegen_flags: <defaults>
</compile_context>

<pallas_src>
import functools

import jax
import jax.numpy as jnp
from jax.experimental import pallas as pl
from jax.experimental.pallas import tpu as pltpu


def _rmsnorm_affine_kernel(x_ref, w_ref, o_ref, *, eps, inv_h):
    # x_ref: (tile_rows, Hp) ; w_ref: (1, Hp)
    x = x_ref[...].astype(jnp.float32)
    # mean(x*x) over the *real* hidden size (padding columns are zero).
    ms = jnp.sum(x * x, axis=-1, keepdims=True) * inv_h
    inv = jax.lax.rsqrt(ms + eps)
    o_ref[...] = (x * inv * w_ref[...].astype(jnp.float32)).astype(o_ref.dtype)


def _rmsnorm_noaffine_kernel(x_ref, o_ref, *, eps, inv_h):
    x = x_ref[...].astype(jnp.float32)
    ms = jnp.sum(x * x, axis=-1, keepdims=True) * inv_h
    inv = jax.lax.rsqrt(ms + eps)
    o_ref[...] = (x * inv).astype(o_ref.dtype)


def _vmem_capacity_bytes():
    """Physical VMEM of the local TPU (v5e/v6e: 128 MiB, v7x: 64 MiB)."""
    try:
        return int(pltpu.get_tpu_info().vmem_capacity_bytes)
    except Exception:
        return 64 * 1024 * 1024  # conservative (v7x-sized) fallback


def _pick_tile_rows(N, Hp, itemsize, align, vmem_budget):
    # Per-row VMEM footprint: double-buffered input + output blocks in the I/O
    # dtype (4 tiles) plus ~2 live f32 intermediates of the kernel body
    # (the upcast copy and the normalized product).
    per_row = Hp * itemsize * 4 + Hp * 4 * 2
    tr = max(align, (vmem_budget // max(per_row, 1)) // align * align)
    tr = min(tr, 2048)
    if tr >= N:
        # Whole slab fits in one block.  For moderate N still split into >=2
        # parallel blocks so both v7x TensorCores get work; tiny N stays as a
        # single block equal to the full row extent (always a legal block dim).
        if N > 2 * align:
            half = ((pl.cdiv(N, 2) + align - 1) // align) * align
            tr = half if half < N else N
        else:
            tr = N
    return tr, per_row


def rmsnorm(x, weight=None, eps: float = 1e-6, *, tile_rows=None):
    """RMSNorm over the last axis of x. weight has shape (hidden,) or is None."""
    orig_shape = x.shape
    H = orig_shape[-1]
    x2d = x.reshape(-1, H)
    N = x2d.shape[0]
    itemsize = jnp.dtype(x.dtype).itemsize
    align = max(8, 32 // itemsize)  # sublane packing: f32 -> 8, bf16 -> 16, int8 -> 32

    # Lane-dense hidden dim: pad to a multiple of 128 (unmasked vector stores).
    Hp = max(128, ((H + 127) // 128) * 128)
    pad_h = Hp - H
    if pad_h:
        x2d = jnp.pad(x2d, ((0, 0), (0, pad_h)))

    affine = weight is not None
    if affine:
        w2d = jnp.reshape(weight, (1, H))
        if pad_h:
            w2d = jnp.pad(w2d, ((0, 0), (0, pad_h)))

    # Tile sizing against the per-generation VMEM capacity.
    vmem_cap = _vmem_capacity_bytes()
    budget = min(vmem_cap // 2, 64 * 1024 * 1024)
    if tile_rows is None:
        tr, per_row = _pick_tile_rows(N, Hp, itemsize, align, budget)
    else:
        tr = max(align, (int(tile_rows) // align) * align)
        if tr >= N:
            tr = N
        per_row = Hp * itemsize * 4 + Hp * 4 * 2

    grid = (pl.cdiv(N, tr),)

    # Explicit VMEM limit (v5e default scoped limit is only 16 MiB).
    footprint = per_row * tr + 2 * Hp * itemsize
    vmem_limit = footprint + (8 << 20)
    vmem_limit = max(vmem_limit, 16 << 20)
    vmem_limit = int(min(vmem_limit, vmem_cap * 3 // 4))

    x_spec = pl.BlockSpec((tr, Hp), lambda i: (i, 0))
    o_spec = pl.BlockSpec((tr, Hp), lambda i: (i, 0))

    cost = pl.CostEstimate(
        flops=int((4 if affine else 3) * N * H),
        transcendentals=int(N),
        bytes_accessed=int(2 * N * Hp * itemsize + (Hp * itemsize if affine else 0)),
    )

    if affine:
        kernel = functools.partial(_rmsnorm_affine_kernel, eps=float(eps), inv_h=1.0 / H)
        in_specs = [x_spec, pl.BlockSpec((1, Hp), lambda i: (0, 0))]
        operands = (x2d, w2d)
    else:
        kernel = functools.partial(_rmsnorm_noaffine_kernel, eps=float(eps), inv_h=1.0 / H)
        in_specs = [x_spec]
        operands = (x2d,)

    # TODO(synk): for very large H (f32 H >~ 32K on v7x) add a second
    # 'arbitrary' grid axis over H with a (tr, 1) f32 scratch accumulator.
    out = pl.pallas_call(
        kernel,
        out_shape=jax.ShapeDtypeStruct((N, Hp), x.dtype),
        grid_spec=pltpu.PrefetchScalarGridSpec(
            num_scalar_prefetch=0,
            grid=grid,
            in_specs=in_specs,
            out_specs=o_spec,
        ),
        compiler_params=pltpu.CompilerParams(
            dimension_semantics=("parallel",),
            vmem_limit_bytes=vmem_limit,
        ),
        cost_estimate=cost,
    )(*operands)

    if pad_h:
        out = out[:, :H]
    return out.reshape(orig_shape)


def rmsnorm_ref(x, weight, eps=1e-6):
    xf = x.astype(jnp.float32)
    ms = jnp.mean(xf * xf, axis=-1, keepdims=True)
    y = xf * jax.lax.rsqrt(ms + eps)
    if weight is not None:
        y = weight.astype(jnp.float32) * y
    return y.astype(x.dtype)


if __name__ == "__main__":
    key = jax.random.PRNGKey(0)
    batch, seq, hidden = 2, 8, 32
    x = jax.random.normal(key, (batch, seq, hidden), dtype=jnp.float32)

    # Deterministic parameter init: the module initializes weight = ones(hidden).
    weight = jnp.ones((hidden,), dtype=jnp.float32)
    eps = 1e-6

    # elementwise_affine=True path
    y = jax.block_until_ready(rmsnorm(x, weight, eps))
    y_ref = rmsnorm_ref(x, weight, eps)
    assert y.shape == x.shape
    assert jnp.allclose(y, y_ref, atol=1e-5, rtol=1e-5), "affine mismatch vs reference"

    # elementwise_affine=False path (no weight operand at all)
    y2 = jax.block_until_ready(rmsnorm(x, None, eps))
    y2_ref = rmsnorm_ref(x, None, eps)
    assert jnp.allclose(y2, y2_ref, atol=1e-5, rtol=1e-5), "no-affine mismatch vs reference"

    # lane-dense (H multiple of 128) bf16 path
    xb = jax.random.normal(jax.random.PRNGKey(1), (2, 8, 256), dtype=jnp.bfloat16)
    wb = jnp.ones((256,), dtype=jnp.bfloat16)
    yb = jax.block_until_ready(rmsnorm(xb, wb, eps))
    yb_ref = rmsnorm_ref(xb, wb, eps)
    assert jnp.allclose(
        yb.astype(jnp.float32), yb_ref.astype(jnp.float32), atol=2e-2, rtol=2e-2
    ), "bf16 mismatch vs reference"

    print("KERNEL_OK")
</pallas_src>

<mosaic_0001>
module attributes {stable_mosaic.version = 11 : i64} {
  func.func @_rmsnorm_affine_kernel(%arg0: i32, %arg1: memref<16x128xf32, #tpu.memory_space<vmem>>, %arg2: memref<1x128xf32, #tpu.memory_space<vmem>>, %arg3: memref<16x128xf32, #tpu.memory_space<vmem>>) attributes {dimension_semantics = [#tpu.dimension_semantics<parallel>], iteration_bounds = array<i64: 1>, scalar_prefetch = 0 : i64, scratch_operands = 0 : i64, tpu.core_type = #tpu.core_type<tc>, window_params = [{transform_indices = @transform_0, window_bounds = array<i64: 16, 128>}, {pipeline_mode = #tpu.pipeline_mode<synchronous>, transform_indices = @transform_1, window_bounds = array<i64: 1, 128>}, {transform_indices = @transform_2, window_bounds = array<i64: 16, 128>}]} {
    %c0 = arith.constant 0 : index
    %c0_0 = arith.constant 0 : index
    %0 = vector.load %arg1[%c0, %c0_0] : memref<16x128xf32, #tpu.memory_space<vmem>>, vector<16x128xf32>
    %1 = arith.mulf %0, %0 : vector<16x128xf32>
    %cst = arith.constant dense<0.000000e+00> : vector<16xf32>
    %2 = vector.multi_reduction <add>, %1, %cst [1] : vector<16x128xf32> to vector<16xf32>
    %3 = vector.shape_cast %2 : vector<16xf32> to vector<16x1xf32>
    %cst_1 = arith.constant 3.125000e-02 : f32
    %4 = vector.broadcast %cst_1 : f32 to vector<16x1xf32>
    %5 = arith.mulf %3, %4 : vector<16x1xf32>
    %cst_2 = arith.constant 9.99999997E-7 : f32
    %6 = vector.broadcast %cst_2 : f32 to vector<16x1xf32>
    %7 = arith.addf %5, %6 : vector<16x1xf32>
    %8 = math.rsqrt %7 : vector<16x1xf32>
    %9 = vector.broadcast %8 : vector<16x1xf32> to vector<16x128xf32>
    %10 = arith.mulf %0, %9 : vector<16x128xf32>
    %c0_3 = arith.constant 0 : index
    %c0_4 = arith.constant 0 : index
    %11 = vector.load %arg2[%c0_3, %c0_4] : memref<1x128xf32, #tpu.memory_space<vmem>>, vector<1x128xf32>
    %12 = vector.broadcast %11 : vector<1x128xf32> to vector<16x128xf32>
    %13 = arith.mulf %10, %12 : vector<16x128xf32>
    %c0_5 = arith.constant 0 : index
    %c0_6 = arith.constant 0 : index
    %14 = vector.load %arg3[%c0_5, %c0_6] : memref<16x128xf32, #tpu.memory_space<vmem>>, vector<16x128xf32>
    tpu.vector_store %arg3[%c0_5, %c0_6], %13 {strides = array<i32>} : memref<16x128xf32, #tpu.memory_space<vmem>>, vector<16x128xf32>,
    return
  }
  func.func @transform_0(%arg0: i32) -> (i32, i32) {
    %c0_i32 = arith.constant 0 : i32
    %c0_i32_0 = arith.constant 0 : i32
    return %arg0, %c0_i32 : i32, i32
  }
  func.func @transform_1(%arg0: i32) -> (i32, i32) {
    %c0_i32 = arith.constant 0 : i32
    %c0_i32_0 = arith.constant 0 : i32
    %c0_i32_1 = arith.constant 0 : i32
    return %c0_i32, %c0_i32_0 : i32, i32
  }
  func.func @transform_2(%arg0: i32) -> (i32, i32) {
    %c0_i32 = arith.constant 0 : i32
    %c0_i32_0 = arith.constant 0 : i32
    return %arg0, %c0_i32 : i32, i32
  }
}

</mosaic_0001>

<llo_original>
// kernel: tpu_custom_call.1
$region0: #{tpu_custom_call.1}
  #allocation0 [shape = 'u32[]', space=smem, size = 0x4, offset = 0x4, fixed_abs, tag = 'smem constant byte address 0x4 - core index']
  #allocation1 [shape = 'u32[144,128]{1,0:T(1,128)}', space=vmem, size = 0x12000, scoped, tag = 'internal scratch']
  %s0 = inlined_call_operand.hbm [shape: f32[16,128], index: 0, kind: input, shape index: {}]
  %s1 = inlined_call_operand.vmem [shape: f32[1,128], index: 1, kind: input, shape index: {}]
  %s2 = inlined_call_operand.hbm [shape: f32[16,128], index: 2, kind: output, shape index: {}]
  %s3 = sld [smem:[#allocation0]]
  $region22: #{tpu_custom_call.1} parent=0
    _
  %s5 = ssub.s32 1, %s3
  %s6 = scalar_select 0, %s5, %s3
  $region1: #{tpu_custom_call.1} parent=0
    #allocation2 [shape = 'u8[8192]{0}', space=vmem, size = 0x2000, scoped, tag = 'input window, operand 0, single buffered']
    #allocation3 [shape = 's32[1]{0}', space=sflag, size = 0x4, scoped, tag = 'scoped memory for tpu_custom_call.1']
    #allocation4 [shape = 's32[1]{0}', space=sflag, size = 0x4, scoped, tag = 'scoped memory for tpu_custom_call.1']
    #allocation5 [shape = 'u8[8192]{0}', space=vmem, size = 0x2000, scoped, tag = 'output window, operand 0, single buffered']
    %7 = vsyncpa [#allocation3], 0
    %8 = vsyncpa [#allocation4], 0
    // Predicated region
    $region2: #{tpu_custom_call.1} parent=1 // pred_check
      _
    $region3: #{tpu_custom_call.1} parent=1 // pred_check_branch
      %10 = sbr.rel (0) target = $region5
    $region4: #{tpu_custom_call.1} parent=1 // pred_region
      %s12 = ssub.s32 256, 256
      %13 = vsyncadd [#allocation3], %s12
      %s14 = sshll.u32 [#allocation2], 4
      %s15 = int_to_ptr.vmem [resolvable:$true] %s14
      %20 = dma.hbm_to_vmem [thread:$0]  %s0, 256, %s15, [#allocation3], 128, 128, 8
    $region5: #{tpu_custom_call.1} parent=1 // pred_fallthru
      _
    // Predicated region
    $region6: #{tpu_custom_call.1} parent=1 // pred_check
      _
    $region7: #{tpu_custom_call.1} parent=1 // pred_check_branch
      %22 = sbr.rel (0) target = $region9
    $region8: #{tpu_custom_call.1} parent=1 // pred_region
      _
    $region9: #{tpu_custom_call.1} parent=1 // pred_fallthru
      _
    // Predicated region
    $region10: #{tpu_custom_call.1} parent=1 // pred_check
      _
    $region11: #{tpu_custom_call.1} parent=1 // pred_check_branch
      %24 = sbr.rel (0) target = $region13
    $region12: #{tpu_custom_call.1} parent=1 // pred_region
      %25 = dma.done [#allocation3], 256
    $region13: #{tpu_custom_call.1} parent=1 // pred_fallthru
      _
    %v26 = vld [vmem:[#allocation2] sm:$0xff]
    %v27 = vld [vmem:[#allocation2 + $0x8] sm:$0xff]
    %v28 = vmul.f32 %v26, %v26
    %v29 = vmul.f32 %v27, %v27
    %30 = vadd.xlane.f32.xlu0 %v28
    %v31 = vpop.xlane.xlu0 %30
    %32 = vadd.xlane.f32.xlu0 %v29
    %v33 = vpop.xlane.xlu0 %32
    %v34 = vmul.f32 %v31, 0.03125
    %v35 = vmul.f32 %v33, 0.03125
    %v36 = vadd.f32 %v34, 1e-06
    %v37 = vadd.f32 %v35, 1e-06
    %v38 = vrsqrt.pop %v36
    %v39 = vrsqrt.pop %v37
    %v40 = vmul.f32 %v26, %v38
    %v41 = vmul.f32 %v27, %v39
    %v42 = vld [vmem:[%s1] sm:$0x1]
    %v44 = vlaneseq
    %v45 = vshrl.u32 %v44, 7
    %v46 = vsub.s32 0, %v45
    %v47 = vrot.slane %v42, %v46
    %v49 = vmul.f32 %v40, %v47
    %v50 = vmul.f32 %v41, %v47
    %51 = vst [vmem:[#allocation5] sm:$0xff] %v49
    %52 = vst [vmem:[#allocation5 + $0x8] sm:$0xff] %v50
    // Predicated region
    $region14: #{tpu_custom_call.1} parent=1 // pred_check
      _
    $region15: #{tpu_custom_call.1} parent=1 // pred_check_branch
      %54 = sbr.rel (0) target = $region17
    $region16: #{tpu_custom_call.1} parent=1 // pred_region
      %s56 = ssub.s32 256, 256
      %57 = vsyncadd [#allocation4], %s56
      %s58 = sshll.u32 [#allocation5], 4
      %s59 = int_to_ptr.vmem [resolvable:$true] %s58
      %64 = dma.vmem_to_hbm [thread:$0]  %s59, 256, %s2, [#allocation4], 128, 128, 8
    $region17: #{tpu_custom_call.1} parent=1 // pred_fallthru
      _
    // Predicated region
    $region18: #{tpu_custom_call.1} parent=1 // pred_check
      _
    $region19: #{tpu_custom_call.1} parent=1 // pred_check_branch
      %66 = sbr.rel (0) target = $region21
    $region20: #{tpu_custom_call.1} parent=1 // pred_region
      %67 = dma.done [#allocation4], 256
    $region21: #{tpu_custom_call.1} parent=1 // pred_fallthru
      _
    %68 = vsyncpa [#allocation3], 1
    %69 = vsyncpa [#allocation4], 1

</llo_original>
